<compile_context>
chip_gen: v7x
topology: tpu7x:2x2x1
jax: 0.10.0
libtpu: 0.0.40
codegen_flags: <defaults>
</compile_context>

<pallas_src>
import functools
import math

import jax
import jax.numpy as jnp
from jax.experimental import pallas as pl
from jax.experimental.pallas import tpu as pltpu


def _global_mask_kernel(feat_ref, idx_ref, e_ref, smt_ref, out_ref, *, B, P):
    # idx arrives as int8 (int32 only if B > 127); values are < 2**24 so the
    # f32 compare below is exact.
    idx_f = idx_ref[...].astype(jnp.float32)               # [tile_rows, P]
    smt = smt_ref[...]                                      # [B, PC] f32
    e = e_ref[...] if P > 1 else None                       # [P, PC] 0/1

    def one_hot_lanes(b):
        cmp_b = (idx_f == float(b)).astype(jnp.float32)     # [tile_rows, P] in {0,1}
        if P > 1:
            # 0/1 matmul expands each point's flag across its C lanes; exact.
            return jnp.dot(cmp_b, e, preferred_element_type=jnp.float32)
        return cmp_b                                        # [tile_rows, 1] broadcasts

    # gathered[r, p*C + c] == softmax(vecter)[idx[r, p], c]
    gathered = one_hot_lanes(0) * smt[0:1, :]
    for b in range(1, B):                                   # B is small & static
        gathered = gathered + one_hot_lanes(b) * smt[b:b + 1, :]

    feat = feat_ref[...]
    if feat.dtype == jnp.bfloat16:
        # Low-precision epilogue (v6e/v7x bf16 VALU): halves vreg pressure.
        out = feat * gathered.astype(jnp.bfloat16)
    else:
        out = feat.astype(jnp.float32) * gathered
    out_ref[...] = out.astype(out_ref.dtype)


def _round_up(x, m):
    return -(-x // m) * m


def global_mask_layer_v3(features, vecter, point_idx, *,
                         block_bytes=2 * 1024 * 1024):
    """features: [N, C], vecter: [B, C], point_idx: [N] int -> [N, C]."""
    N, C = features.shape
    B, C2 = vecter.shape
    assert C == C2, "input.features.shape[-1] must equal vecter.shape[-1]"
    itemsize = features.dtype.itemsize

    # Hoisted softmax: constant across the grid, computed once by XLA.
    sm = jax.nn.softmax(vecter.astype(jnp.float32), axis=1)             # [B, C]

    # Lane-dense packing: P points span PC = lcm(C, 128) lanes (PC % 128 == 0).
    P = 128 // math.gcd(C, 128)
    PC = P * C

    # int8 batch ids: 4x less idx HBM traffic (B < 128 always in practice).
    idx_dtype = jnp.int8 if B <= 127 else jnp.int32
    idx = point_idx.astype(idx_dtype)

    # Ragged tail in points: pad by < P points only (never to a tile multiple).
    # Padded rows multiply zero features by sm[0], and the same < P rows are
    # sliced back off below, so the pad never changes the visible result.
    rem = N % P
    if rem:
        pad_pts = P - rem
        features = jnp.pad(features, ((0, pad_pts), (0, 0)))
        idx = jnp.pad(idx, ((0, pad_pts),))
        n_pts = N + pad_pts
    else:
        n_pts = N                                # common case: zero extra copies
    rows = n_pts // P

    feat_packed = features.reshape(rows, PC)     # contiguous -> free bitcast
    idx_packed = idx.reshape(rows, P)

    # Tile sizing: ~block_bytes of features per grid step, multiple of 32 rows
    # (keeps the int8 idx block aligned to its native (32, 128) tiling), and at
    # least two grid steps when there is enough work (v7x has 2 TensorCores).
    bytes_per_row = PC * itemsize
    budget_rows = max(32, (block_bytes // bytes_per_row) // 32 * 32)
    if budget_rows < rows:
        tile_rows = budget_rows
    elif rows >= 64:
        tile_rows = min(_round_up(pl.cdiv(rows, 2), 32), rows)
    else:
        tile_rows = rows                         # tiny input: one full block
    grid = pl.cdiv(rows, tile_rows)              # ragged last block is masked

    # 0/1 lane-expansion matrix E[p, p*C + c] = 1; softmax tiled across packs.
    e = jnp.repeat(jnp.eye(P, dtype=jnp.float32), C, axis=1)            # [P, PC]
    smt = jnp.tile(sm, (1, P))                                          # [B, PC]

    kernel = functools.partial(_global_mask_kernel, B=B, P=P)

    # Scheduler hint: this custom call is bandwidth-bound.
    bytes_accessed = (2 * n_pts * C * itemsize
                      + n_pts * jnp.dtype(idx_dtype).itemsize
                      + (P + B) * PC * 4)
    cost = pl.CostEstimate(flops=2 * n_pts * C, transcendentals=0,
                           bytes_accessed=int(bytes_accessed))

    # Double-buffered in/out blocks fit the default scoped VMEM (v5e 16 MiB)
    # at the 2 MiB budget; only raise the limit if a huge C pushes past it.
    feat_block_bytes = tile_rows * PC * itemsize
    pipeline_bytes = (2 * (2 * feat_block_bytes
                           + tile_rows * P * jnp.dtype(idx_dtype).itemsize)
                      + (P + B) * PC * 4
                      + 2 * tile_rows * PC * 4)  # f32 intermediates headroom
    cp_kwargs = dict(dimension_semantics=("parallel",))
    if pipeline_bytes > 14 * 1024 * 1024:
        cp_kwargs["vmem_limit_bytes"] = int(min(pipeline_bytes + (2 << 20),
                                                30 * 1024 * 1024))

    out_packed = pl.pallas_call(
        kernel,
        out_shape=jax.ShapeDtypeStruct((rows, PC), features.dtype),
        grid_spec=pl.GridSpec(
            grid=(grid,),
            in_specs=[
                pl.BlockSpec((tile_rows, PC), lambda i: (i, 0)),  # packed feats
                pl.BlockSpec((tile_rows, P), lambda i: (i, 0)),   # packed ids
                pl.BlockSpec((P, PC), lambda i: (0, 0)),          # expansion mat
                pl.BlockSpec((B, PC), lambda i: (0, 0)),          # tiled softmax
            ],
            out_specs=pl.BlockSpec((tile_rows, PC), lambda i: (i, 0)),
        ),
        compiler_params=pltpu.CompilerParams(**cp_kwargs),
        cost_estimate=cost,
    )(feat_packed, idx_packed, e, smt)

    out = out_packed.reshape(n_pts, C)           # free bitcast
    return out[:N] if rem else out


if __name__ == "__main__":
    key = jax.random.PRNGKey(0)
    k1, k2, k3 = jax.random.split(key, 3)

    # Small shapes consistent with the module: B=2 samples, C=16 channels,
    # N=2000 active points.  N is a multiple of P=8 (zero-copy packing path)
    # but NOT of the tile size, so the ragged-last-block masking and the
    # 2-step "parallel" grid are both exercised.
    B, C, N = 2, 16, 2000
    features = jax.random.normal(k1, (N, C), dtype=jnp.float32)
    vecter = jax.random.normal(k2, (B, C), dtype=jnp.float32)
    point_idx = jax.random.randint(k3, (N,), 0, B, dtype=jnp.int32)

    out = global_mask_layer_v3(features, vecter, point_idx)
    out = jax.block_until_ready(out)

    # Pure-JAX reference of the PyTorch forward.
    ref = features * jax.nn.softmax(vecter, axis=1)[point_idx]

    assert out.shape == (N, C)
    assert jnp.allclose(out, ref, atol=1e-6, rtol=1e-6), "mismatch vs reference"

    # TODO(synk): scn metadata / spatial_size passthrough has no Pallas
    # equivalent; only the feature computation is implemented.
    print("KERNEL_OK")
</pallas_src>

<mosaic_0001>
module attributes {stable_mosaic.version = 11 : i64} {
  func.func @_global_mask_kernel(%arg0: i32, %arg1: memref<128x128xf32, #tpu.memory_space<vmem>>, %arg2: memref<128x8xi8, #tpu.memory_space<vmem>>, %arg3: memref<8x128xf32, #tpu.memory_space<vmem>>, %arg4: memref<2x128xf32, #tpu.memory_space<vmem>>, %arg5: memref<128x128xf32, #tpu.memory_space<vmem>>) attributes {dimension_semantics = [#tpu.dimension_semantics<parallel>], iteration_bounds = array<i64: 2>, scalar_prefetch = 0 : i64, scratch_operands = 0 : i64, tpu.core_type = #tpu.core_type<tc>, window_params = [{transform_indices = @transform_0, window_bounds = array<i64: 128, 128>}, {transform_indices = @transform_1, window_bounds = array<i64: 128, 8>}, {pipeline_mode = #tpu.pipeline_mode<synchronous>, transform_indices = @transform_2, window_bounds = array<i64: 8, 128>}, {pipeline_mode = #tpu.pipeline_mode<synchronous>, transform_indices = @transform_3, window_bounds = array<i64: 2, 128>}, {transform_indices = @transform_4, window_bounds = array<i64: 128, 128>}]} {
    %c0 = arith.constant 0 : index
    %c0_0 = arith.constant 0 : index
    %0 = vector.load %arg2[%c0, %c0_0] : memref<128x8xi8, #tpu.memory_space<vmem>>, vector<128x8xi8>
    %1 = arith.sitofp %0 : vector<128x8xi8> to vector<128x8xf32>
    %c0_1 = arith.constant 0 : index
    %c0_2 = arith.constant 0 : index
    %2 = vector.load %arg4[%c0_1, %c0_2] : memref<2x128xf32, #tpu.memory_space<vmem>>, vector<2x128xf32>
    %c0_3 = arith.constant 0 : index
    %c0_4 = arith.constant 0 : index
    %3 = vector.load %arg3[%c0_3, %c0_4] : memref<8x128xf32, #tpu.memory_space<vmem>>, vector<8x128xf32>
    %cst = arith.constant 0.000000e+00 : f32
    %4 = vector.broadcast %cst : f32 to vector<128x8xf32>
    %5 = arith.cmpf oeq, %1, %4 : vector<128x8xf32>
    %6 = arith.extui %5 : vector<128x8xi1> to vector<128x8xi32>
    %7 = arith.sitofp %6 : vector<128x8xi32> to vector<128x8xf32>
    %cst_5 = arith.constant dense<0.000000e+00> : vector<128x128xf32>
    %8 = tpu.matmul %7, %3, %cst_5 {dimension_numbers = #tpu.dot_dimension_numbers<[1], [0], [0], [1], [0, 0, 1, 1], [], []>} : vector<128x8xf32>, vector<8x128xf32>, vector<128x128xf32> -> vector<128x128xf32>
    %9 = vector.extract_strided_slice %2 {offsets = [0, 0], sizes = [1, 128], strides = [1, 1]} : vector<2x128xf32> to vector<1x128xf32>
    %10 = vector.broadcast %9 : vector<1x128xf32> to vector<128x128xf32>
    %11 = arith.mulf %8, %10 : vector<128x128xf32>
    %cst_6 = arith.constant 1.000000e+00 : f32
    %12 = vector.broadcast %cst_6 : f32 to vector<128x8xf32>
    %13 = arith.cmpf oeq, %1, %12 : vector<128x8xf32>
    %14 = arith.extui %13 : vector<128x8xi1> to vector<128x8xi32>
    %15 = arith.sitofp %14 : vector<128x8xi32> to vector<128x8xf32>
    %cst_7 = arith.constant dense<0.000000e+00> : vector<128x128xf32>
    %16 = tpu.matmul %15, %3, %cst_7 {dimension_numbers = #tpu.dot_dimension_numbers<[1], [0], [0], [1], [0, 0, 1, 1], [], []>} : vector<128x8xf32>, vector<8x128xf32>, vector<128x128xf32> -> vector<128x128xf32>
    %17 = vector.extract_strided_slice %2 {offsets = [1, 0], sizes = [1, 128], strides = [1, 1]} : vector<2x128xf32> to vector<1x128xf32>
    %18 = vector.broadcast %17 : vector<1x128xf32> to vector<128x128xf32>
    %19 = arith.mulf %16, %18 : vector<128x128xf32>
    %20 = arith.addf %11, %19 : vector<128x128xf32>
    %c0_8 = arith.constant 0 : index
    %c0_9 = arith.constant 0 : index
    %21 = vector.load %arg1[%c0_8, %c0_9] : memref<128x128xf32, #tpu.memory_space<vmem>>, vector<128x128xf32>
    %22 = arith.mulf %21, %20 : vector<128x128xf32>
    %c0_10 = arith.constant 0 : index
    %c0_11 = arith.constant 0 : index
    %23 = vector.load %arg5[%c0_10, %c0_11] : memref<128x128xf32, #tpu.memory_space<vmem>>, vector<128x128xf32>
    tpu.vector_store %arg5[%c0_10, %c0_11], %22 {strides = array<i32>} : memref<128x128xf32, #tpu.memory_space<vmem>>, vector<128x128xf32>,
    return
  }
  func.func @transform_0(%arg0: i32) -> (i32, i32) {
    %c0_i32 = arith.constant 0 : i32
    %c0_i32_0 = arith.constant 0 : i32
    return %arg0, %c0_i32 : i32, i32
  }
  func.func @transform_1(%arg0: i32) -> (i32, i32) {
    %c0_i32 = arith.constant 0 : i32
    %c0_i32_0 = arith.constant 0 : i32
    return %arg0, %c0_i32 : i32, i32
  }
  func.func @transform_2(%arg0: i32) -> (i32, i32) {
    %c0_i32 = arith.constant 0 : i32
    %c0_i32_0 = arith.constant 0 : i32
    %c0_i32_1 = arith.constant 0 : i32
    return %c0_i32, %c0_i32_0 : i32, i32
  }
  func.func @transform_3(%arg0: i32) -> (i32, i32) {
    %c0_i32 = arith.constant 0 : i32
    %c0_i32_0 = arith.constant 0 : i32
    %c0_i32_1 = arith.constant 0 : i32
    return %c0_i32, %c0_i32_0 : i32, i32
  }
  func.func @transform_4(%arg0: i32) -> (i32, i32) {
    %c0_i32 = arith.constant 0 : i32
    %c0_i32_0 = arith.constant 0 : i32
    return %arg0, %c0_i32 : i32, i32
  }
}

</mosaic_0001>

<llo_original>
// kernel: tpu_custom_call.1
$region0: #{tpu_custom_call.1}
  #allocation0 [shape = 'u32[]', space=smem, size = 0x4, offset = 0x4, fixed_abs, tag = 'smem constant byte address 0x4 - core index']
  #allocation1 [shape = 'u32[144,128]{1,0:T(1,128)}', space=vmem, size = 0x12000, scoped, tag = 'internal scratch']
  %s0 = inlined_call_operand.hbm [shape: f32[250,128], index: 0, kind: input, shape index: {}]
  %s1 = inlined_call_operand.vmem [shape: s8[250,8], index: 1, kind: input, shape index: {}]
  %s2 = inlined_call_operand.vmem [shape: f32[8,128], index: 2, kind: input, shape index: {}]
  %s3 = inlined_call_operand.vmem [shape: f32[2,128], index: 3, kind: input, shape index: {}]
  %s4 = inlined_call_operand.hbm [shape: f32[250,128], index: 4, kind: output, shape index: {}]
  %s5 = sld [smem:[#allocation0]]
  $region53: #{tpu_custom_call.1} parent=0
    _
  %s7 = ssub.s32 1, %s5
  %s8 = scalar_select 0, %s7, %s5
  $region1: #{tpu_custom_call.1} parent=0
    #allocation2 [shape = 'u8[131072]{0}', space=vmem, size = 0x20000, scoped, tag = 'input window, operand 0']
    #allocation3 [shape = 's32[2]{0}', space=sflag, size = 0x8, scoped, tag = 'scoped memory for tpu_custom_call.1']
    #allocation4 [shape = 's32[2]{0}', space=sflag, size = 0x8, scoped, tag = 'scoped memory for tpu_custom_call.1']
    #allocation5 [shape = 'u8[131072]{0}', space=vmem, size = 0x20000, scoped, tag = 'output window, operand 0']
    %9 = vsyncpa [#allocation3], 0
    %s10 = scalar_lea.sflag [#allocation3], 1
    %11 = vsyncpa %s10, 0
    %12 = vsyncpa [#allocation4], 0
    %s13 = scalar_lea.sflag [#allocation4], 1
    %14 = vsyncpa %s13, 0
    loop: start=0, step=1, limit=4
    $region2: #{tpu_custom_call.1} parent=1 // loop_pre_header
      _
    $region3: #{tpu_custom_call.1} parent=1 // loop_header
      %s16 = sphi 0, %s20
      %p17 = scmp.ge.s32.totalorder %s16, 4
      %s26 = sphi 0, %s28
      %s29 = sphi 0, %s26
      %s30 = sphi 0, %s29
      %s46 = sphi 0, %s30
      %s52 = sphi 0, %s54
      %s55 = sphi 0, %s52
      %s56 = sphi 0, %s55
      %s72 = sphi 0, %s56
      %s76 = sphi 0, %s76
      %s78 = sphi 0, %s76
      %s79 = sphi 0, %s78
      %s93 = sphi 0, %s79
      %s97 = sphi 0, %s97
      %s99 = sphi 0, %s97
      %s100 = sphi 0, %s99
      %s114 = sphi 0, %s100
      %s120 = sphi 0, %s122
      %s123 = sphi 0, %s120
      %s124 = sphi 0, %s123
      %s140 = sphi 0, %s124
    $region4: #{tpu_custom_call.1} parent=1 // loop_header_branch
      %19 = sbr.rel (%p17) target = $region8
    $region5: #{tpu_custom_call.1} parent=1 // loop_body
      %s21 = ssub.s32 %s16, 1
      %s22 = ssub.s32 %s16, 2
      %s23 = sadd.s32 %s16, 1
      %s24 = ssub.s32 %s16, %s23
      %p25 = scmp.eq.s32.totalorder %s24, 0
      %s27 = sadd.s32 %s26, 1
      %s28 = scalar_select %p25, %s26, %s27
      %p31 = pneg %p25
      %p32 = scmp.eq.s32.totalorder %s16, 1
      %p33 = por %p31, %p32
      %p34 = scmp.ne.s32.totalorder %s26, %s29
      %p35 = scmp.eq.s32.totalorder %s16, 0
      %p36 = por %p34, %p35
      %p37 = scmp.ne.s32.totalorder %s26, %s29
      %p38 = scmp.eq.s32.totalorder %s21, 1
      %p39 = por %p37, %p38
      %p40 = scmp.ne.s32.totalorder %s29, %s30
      %p41 = scmp.eq.s32.totalorder %s21, 0
      %p42 = por %p40, %p41
      %p43 = scmp.ne.s32.totalorder %s29, %s30
      %p44 = scmp.eq.s32.totalorder %s22, 1
      %p45 = por %p43, %p44
      %p47 = scmp.ne.s32.totalorder %s30, %s46
      %p48 = scmp.eq.s32.totalorder %s22, 0
      %p49 = por %p47, %p48
      %s50 = ssub.s32 %s16, %s23
      %p51 = scmp.eq.s32.totalorder %s50, 0
      %s53 = sadd.s32 %s52, 1
      %s54 = scalar_select %p51, %s52, %s53
      %p57 = pneg %p51
      %p58 = scmp.eq.s32.totalorder %s16, 1
      %p59 = por %p57, %p58
      %p60 = scmp.ne.s32.totalorder %s52, %s55
      %p61 = scmp.eq.s32.totalorder %s16, 0
      %p62 = por %p60, %p61
      %p63 = scmp.ne.s32.totalorder %s52, %s55
      %p64 = scmp.eq.s32.totalorder %s21, 1
      %p65 = por %p63, %p64
      %p66 = scmp.ne.s32.totalorder %s55, %s56
      %p67 = scmp.eq.s32.totalorder %s21, 0
      %p68 = por %p66, %p67
      %p69 = scmp.ne.s32.totalorder %s55, %s56
      %p70 = scmp.eq.s32.totalorder %s22, 1
      %p71 = por %p69, %p70
      %p73 = scmp.ne.s32.totalorder %s56, %s72
      %p74 = scmp.eq.s32.totalorder %s22, 0
      %p75 = por %p73, %p74
      %s77 = sadd.s32 %s76, 1
      %p80 = scmp.eq.s32.totalorder %s16, 1
      %p81 = scmp.ne.s32.totalorder %s76, %s78
      %p82 = scmp.eq.s32.totalorder %s16, 0
      %p83 = por %p81, %p82
      %p84 = scmp.ne.s32.totalorder %s76, %s78
      %p85 = scmp.eq.s32.totalorder %s21, 1
      %p86 = por %p84, %p85
      %p87 = scmp.ne.s32.totalorder %s78, %s79
      %p88 = scmp.eq.s32.totalorder %s21, 0
      %p89 = por %p87, %p88
      %p90 = scmp.ne.s32.totalorder %s78, %s79
      %p91 = scmp.eq.s32.totalorder %s22, 1
      %p92 = por %p90, %p91
      %p94 = scmp.ne.s32.totalorder %s79, %s93
      %p95 = scmp.eq.s32.totalorder %s22, 0
      %p96 = por %p94, %p95
      %s98 = sadd.s32 %s97, 1
      %p101 = scmp.eq.s32.totalorder %s16, 1
      %p102 = scmp.ne.s32.totalorder %s97, %s99
      %p103 = scmp.eq.s32.totalorder %s16, 0
      %p104 = por %p102, %p103
      %p105 = scmp.ne.s32.totalorder %s97, %s99
      %p106 = scmp.eq.s32.totalorder %s21, 1
      %p107 = por %p105, %p106
      %p108 = scmp.ne.s32.totalorder %s99, %s100
      %p109 = scmp.eq.s32.totalorder %s21, 0
      %p110 = por %p108, %p109
      %p111 = scmp.ne.s32.totalorder %s99, %s100
      %p112 = scmp.eq.s32.totalorder %s22, 1
      %p113 = por %p111, %p112
      %p115 = scmp.ne.s32.totalorder %s100, %s114
      %p116 = scmp.eq.s32.totalorder %s22, 0
      %p117 = por %p115, %p116
      %s118 = ssub.s32 %s16, %s23
      %p119 = scmp.eq.s32.totalorder %s118, 0
      %s121 = sadd.s32 %s120, 1
      %s122 = scalar_select %p119, %s120, %s121
      %p125 = pneg %p119
      %p126 = scmp.eq.s32.totalorder %s16, 1
      %p127 = por %p125, %p126
      %p128 = scmp.ne.s32.totalorder %s120, %s123
      %p129 = scmp.eq.s32.totalorder %s16, 0
      %p130 = por %p128, %p129
      %p131 = scmp.ne.s32.totalorder %s120, %s123
      %p132 = scmp.eq.s32.totalorder %s21, 1
      %p133 = por %p131, %p132
      %p134 = scmp.ne.s32.totalorder %s123, %s124
      %p135 = scmp.eq.s32.totalorder %s21, 0
      %p136 = por %p134, %p135
      %p137 = scmp.ne.s32.totalorder %s123, %s124
      %p138 = scmp.eq.s32.totalorder %s22, 1
      %p139 = por %p137, %p138
      %p141 = scmp.ne.s32.totalorder %s124, %s140
      %p142 = scmp.eq.s32.totalorder %s22, 0
      %p143 = por %p141, %p142
      %p144 = scmp.le.s32.totalorder 1, %s16
      %p145 = scmp.lt.s32.totalorder %s16, 3
      %p146 = pnand %p144, %p145
      %p147 = pneg %p146
      // Predicated region
      $region9: #{tpu_custom_call.1} parent=5 // pred_check
        _
      $region10: #{tpu_custom_call.1} parent=5 // pred_check_branch
        %149 = sbr.rel (%p146) target = $region12
      $region11: #{tpu_custom_call.1} parent=5 // pred_region
        %s150 = ssub.s32 %s16, 1
        // Predicated region
        $region13: #{tpu_custom_call.1} parent=11 // pred_check
          %p151 = pneg %p89
        $region14: #{tpu_custom_call.1} parent=11 // pred_check_branch
          %153 = sbr.rel (%p151) target = $region16
        $region15: #{tpu_custom_call.1} parent=11 // pred_region
          _
        $region16: #{tpu_custom_call.1} parent=11 // pred_fallthru
          _
        // Predicated region
        $region17: #{tpu_custom_call.1} parent=11 // pred_check
          %p154 = pneg %p110
        $region18: #{tpu_custom_call.1} parent=11 // pred_check_branch
          %156 = sbr.rel (%p154) target = $region20
        $region19: #{tpu_custom_call.1} parent=11 // pred_region
          _
        $region20: #{tpu_custom_call.1} parent=11 // pred_fallthru
          _
      $region12: #{tpu_custom_call.1} parent=5 // pred_fallthru
        _
      %p157 = scmp.lt.s32.totalorder %s16, 2
      // Predicated region
      $region21: #{tpu_custom_call.1} parent=5 // pred_check
        %p158 = pneg %p157
      $region22: #{tpu_custom_call.1} parent=5 // pred_check_branch
        %160 = sbr.rel (%p158) target = $region24
      $region23: #{tpu_custom_call.1} parent=5 // pred_region
        // Predicated region
        $region25: #{tpu_custom_call.1} parent=23 // pred_check
          %p161 = pneg %p36
        $region26: #{tpu_custom_call.1} parent=23 // pred_check_branch
          %163 = sbr.rel (%p161) target = $region28
        $region27: #{tpu_custom_call.1} parent=23 // pred_region
          %s164 = sand.u32 %s26, 1
          %s165 = scalar_lea.sflag [#allocation3], %s164
          %s166 = sand.u32 %s26, 1
          %s167 = smul.addr %s166, 128
          %s168 = scalar_lea.vmem [#allocation2], %s167
          %s169 = smul.u32 16, %s16
          %s171 = ssub.s32 2048, 2048
          %172 = vsyncadd %s165, %s171
          %s173 = smul.addr %s169, 128
          %s174 = scalar_lea.hbm %s0, %s173
          %s175 = sshll.u32 %s168, 4
          %s176 = int_to_ptr.vmem [resolvable:$true] %s175
          %181 = dma.hbm_to_vmem [thread:$0]  %s174, 2048, %s176, %s165, 128, 128, 8
        $region28: #{tpu_custom_call.1} parent=23 // pred_fallthru
          _
        // Predicated region
        $region29: #{tpu_custom_call.1} parent=23 // pred_check
          %p182 = pneg %p62
        $region30: #{tpu_custom_call.1} parent=23 // pred_check_branch
          %184 = sbr.rel (%p182) target = $region32
        $region31: #{tpu_custom_call.1} parent=23 // pred_region
          %s185 = smul.u32 16, %s16
          %p186 = scmp.lt.s32.totalorder %s185, 31
          %s187 = scalar_select %p186, %s185, 31
          %s188 = smul.addr %s187, 2
          %s189 = scalar_lea.vmem %s1, %s188
          %s190 = smul.u32 16, %s16
        $region32: #{tpu_custom_call.1} parent=23 // pred_fallthru
          _
      $region24: #{tpu_custom_call.1} parent=5 // pred_fallthru
        _
      %p191 = scmp.le.s32.totalorder 1, %s16
      %p192 = scmp.lt.s32.totalorder %s16, 3
      %p193 = pnand %p191, %p192
      %p194 = pneg %p193
      // Predicated region
      $region33: #{tpu_custom_call.1} parent=5 // pred_check
        _
      $region34: #{tpu_custom_call.1} parent=5 // pred_check_branch
        %196 = sbr.rel (%p193) target = $region36
      $region35: #{tpu_custom_call.1} parent=5 // pred_region
        %s197 = ssub.s32 %s16, 1
        %s198 = sand.u32 %s29, 1
        %s199 = scalar_lea.sflag [#allocation3], %s198
        %s200 = sand.u32 %s29, 1
        %s201 = smul.addr %s200, 128
        %s202 = scalar_lea.vmem [#allocation2], %s201
        // Predicated region
        $region37: #{tpu_custom_call.1} parent=35 // pred_check
          %p203 = pneg %p42
        $region38: #{tpu_custom_call.1} parent=35 // pred_check_branch
          %205 = sbr.rel (%p203) target = $region40
        $region39: #{tpu_custom_call.1} parent=35 // pred_region
          %206 = dma.done %s199, 2048
        $region40: #{tpu_custom_call.1} parent=35 // pred_fallthru
          _
        %s207 = sand.u32 %s29, 1
        %s208 = scalar_lea.sflag [#allocation3], %s207
        %s209 = sand.u32 %s29, 1
        %s210 = smul.addr %s209, 128
        %s211 = scalar_lea.vmem [#allocation2], %s210
        %p212 = pneg %p42
        %p213 = pneg %p39
        %s214 = smul.u32 16, %s21
        %p215 = scmp.lt.s32.totalorder %s214, 31
        %s216 = scalar_select %p215, %s214, 31
        %s217 = smul.addr %s216, 2
        %s218 = scalar_lea.vmem %s1, %s217
        %p219 = pneg %p68
        %p220 = pneg %p65
        %p221 = pneg %p89
        %p222 = pneg %p86
        %p223 = pneg %p110
        %p224 = pneg %p107
        %p225 = pneg %p136
        %p226 = pneg %p133
        %s227 = sand.u32 %s123, 1
        %s228 = scalar_lea.sflag [#allocation4], %s227
        %s229 = sand.u32 %s123, 1
        %s230 = smul.addr %s229, 128
        %s231 = scalar_lea.vmem [#allocation5], %s230
        %s232 = smul.u32 16, %s21
        %s233 = smul.u32 16, %s21
        %p234 = scmp.lt.s32.totalorder %s233, 31
        %s235 = scalar_select %p234, %s233, 31
        %s236 = smul.addr %s235, 2
        %s237 = scalar_lea.vmem %s1, %s236
        %s238 = smul.u32 16, %s21
        %s239 = smul.u32 16, %s21
        %v240 = vld [vmem:[%s237] sm:$0x3]
        %v241 = vld [vmem:[%s237 + $0x2] sm:$0x3]
        %v242 = vld [vmem:[%s237 + $0x4] sm:$0x3]
        %v243 = vld [vmem:[%s237 + $0x6] sm:$0x3]
        %v244 = vld [vmem:[%s237 + $0x8] sm:$0x3]
        %v245 = vld [vmem:[%s237 + $0xa] sm:$0x3]
        %v246 = vld [vmem:[%s237 + $0xc] sm:$0x3]
        %v247 = vld [vmem:[%s237 + $0xe] sm:$0x3]
        %v248 = vld [vmem:[%s237 + $0x10] sm:$0x3]
        %v249 = vld [vmem:[%s237 + $0x12] sm:$0x3]
        %v250 = vld [vmem:[%s237 + $0x14] sm:$0x3]
        %v251 = vld [vmem:[%s237 + $0x16] sm:$0x3]
        %v252 = vld [vmem:[%s237 + $0x18] sm:$0x3]
        %v253 = vld [vmem:[%s237 + $0x1a] sm:$0x3]
        %v254 = vld [vmem:[%s237 + $0x1c] sm:$0x3]
        %v255 = vld [vmem:[%s237 + $0x1e] sm:$0x3]
        %v256 = vunpack.c.0.s8 %v240
        %v257 = vunpack.c.0.s8 %v241
        %v258 = vunpack.c.0.s8 %v242
        %v259 = vunpack.c.0.s8 %v243
        %v260 = vunpack.c.0.s8 %v244
        %v261 = vunpack.c.0.s8 %v245
        %v262 = vunpack.c.0.s8 %v246
        %v263 = vunpack.c.0.s8 %v247
        %v264 = vunpack.c.0.s8 %v248
        %v265 = vunpack.c.0.s8 %v249
        %v266 = vunpack.c.0.s8 %v250
        %v267 = vunpack.c.0.s8 %v251
        %v268 = vunpack.c.0.s8 %v252
        %v269 = vunpack.c.0.s8 %v253
        %v270 = vunpack.c.0.s8 %v254
        %v271 = vunpack.c.0.s8 %v255
        %v272 = vcvt.s32.f32 %v256
        %v273 = vcvt.s32.f32 %v257
        %v274 = vcvt.s32.f32 %v258
        %v275 = vcvt.s32.f32 %v259
        %v276 = vcvt.s32.f32 %v260
        %v277 = vcvt.s32.f32 %v261
        %v278 = vcvt.s32.f32 %v262
        %v279 = vcvt.s32.f32 %v263
        %v280 = vcvt.s32.f32 %v264
        %v281 = vcvt.s32.f32 %v265
        %v282 = vcvt.s32.f32 %v266
        %v283 = vcvt.s32.f32 %v267
        %v284 = vcvt.s32.f32 %v268
        %v285 = vcvt.s32.f32 %v269
        %v286 = vcvt.s32.f32 %v270
        %v287 = vcvt.s32.f32 %v271
        %v288 = vld [vmem:[%s3] sm:$0x3]
        %v289 = vld [vmem:[%s2] sm:$0xff]
        %vm290 = vcmp.eq.f32.partialorder %v272, 0.0
        %vm291 = vcmp.eq.f32.partialorder %v273, 0.0
        %vm292 = vcmp.eq.f32.partialorder %v274, 0.0
        %vm293 = vcmp.eq.f32.partialorder %v275, 0.0
        %vm294 = vcmp.eq.f32.partialorder %v276, 0.0
        %vm295 = vcmp.eq.f32.partialorder %v277, 0.0
        %vm296 = vcmp.eq.f32.partialorder %v278, 0.0
        %vm297 = vcmp.eq.f32.partialorder %v279, 0.0
        %vm298 = vcmp.eq.f32.partialorder %v280, 0.0
        %vm299 = vcmp.eq.f32.partialorder %v281, 0.0
        %vm300 = vcmp.eq.f32.partialorder %v282, 0.0
        %vm301 = vcmp.eq.f32.partialorder %v283, 0.0
        %vm302 = vcmp.eq.f32.partialorder %v284, 0.0
        %vm303 = vcmp.eq.f32.partialorder %v285, 0.0
        %vm304 = vcmp.eq.f32.partialorder %v286, 0.0
        %vm305 = vcmp.eq.f32.partialorder %v287, 0.0
        %v306 = vsel %vm290, 1, 0
        %v307 = vsel %vm291, 1, 0
        %v308 = vsel %vm292, 1, 0
        %v309 = vsel %vm293, 1, 0
        %v310 = vsel %vm294, 1, 0
        %v311 = vsel %vm295, 1, 0
        %v312 = vsel %vm296, 1, 0
        %v313 = vsel %vm297, 1, 0
        %v314 = vsel %vm298, 1, 0
        %v315 = vsel %vm299, 1, 0
        %v316 = vsel %vm300, 1, 0
        %v317 = vsel %vm301, 1, 0
        %v318 = vsel %vm302, 1, 0
        %v319 = vsel %vm303, 1, 0
        %v320 = vsel %vm304, 1, 0
        %v321 = vsel %vm305, 1, 0
        %v322 = vcvt.s32.f32 %v306
        %v323 = vcvt.s32.f32 %v307
        %v324 = vcvt.s32.f32 %v308
        %v325 = vcvt.s32.f32 %v309
        %v326 = vcvt.s32.f32 %v310
        %v327 = vcvt.s32.f32 %v311
        %v328 = vcvt.s32.f32 %v312
        %v329 = vcvt.s32.f32 %v313
        %v330 = vcvt.s32.f32 %v314
        %v331 = vcvt.s32.f32 %v315
        %v332 = vcvt.s32.f32 %v316
        %v333 = vcvt.s32.f32 %v317
        %v334 = vcvt.s32.f32 %v318
        %v335 = vcvt.s32.f32 %v319
        %v336 = vcvt.s32.f32 %v320
        %v337 = vcvt.s32.f32 %v321
        %vm338 = vcmask 64512
        %v340 = vsel %vm338, %v322, 0
        %v343 = vsel %vm338, %v323, 0
        %v346 = vsel %vm338, %v324, 0
        %v349 = vsel %vm338, %v325, 0
        %v352 = vsel %vm338, %v326, 0
        %v355 = vsel %vm338, %v327, 0
        %v358 = vsel %vm338, %v328, 0
        %v361 = vsel %vm338, %v329, 0
        %v364 = vsel %vm338, %v330, 0
        %v367 = vsel %vm338, %v331, 0
        %v370 = vsel %vm338, %v332, 0
        %v373 = vsel %vm338, %v333, 0
        %v376 = vsel %vm338, %v334, 0
        %v379 = vsel %vm338, %v335, 0
        %v382 = vsel %vm338, %v336, 0
        %v385 = vsel %vm338, %v337, 0
        %387 = vmatprep.subr.mxu0 0.0
        %388 = vmatpush1.msra.mxu0 %v289
        %389 = vmatprep.subr.mxu0 0.0
        %390 = vmatpush1.msra.mxu0 0.0
        %391 = vmatprep.subr.mxu0 0.0
        %392 = vmatpush1.msra.mxu0 0.0
        %393 = vmatprep.subr.mxu0 0.0
        %394 = vmatpush1.msra.mxu0 0.0
        %395 = vmatprep.subr.mxu0 0.0
        %396 = vmatpush1.msra.mxu0 0.0
        %397 = vmatprep.subr.mxu0 0.0
        %398 = vmatpush1.msra.mxu0 0.0
        %399 = vmatprep.subr.mxu0 0.0
        %400 = vmatpush1.msra.mxu0 0.0
        %401 = vmatprep.subr.mxu0 0.0
        %402 = vmatpush1.msra.mxu0 0.0
        %403 = vmatprep.subr.mxu0 0.0
        %404 = vmatpush1.msra.mxu0 0.0
        %405 = vmatprep.subr.mxu0 0.0
        %406 = vmatpush1.msra.mxu0 0.0
        %407 = vmatprep.subr.mxu0 0.0
        %408 = vmatpush1.msra.mxu0 0.0
        %409 = vmatprep.subr.mxu0 0.0
        %410 = vmatpush1.msra.mxu0 0.0
        %411 = vmatprep.subr.mxu0 0.0
        %412 = vmatpush1.msra.mxu0 0.0
        %413 = vmatprep.subr.mxu0 0.0
        %414 = vmatpush1.msra.mxu0 0.0
        %415 = vmatprep.subr.mxu0 0.0
        %416 = vmatpush1.msra.mxu0 0.0
        %417 = vmatprep.subr.mxu0 0.0
        %418 = vmatpush1.msra.mxu0 0.0
        %419 = vmatprep.subr.mxu0 0.0
        %420 = vmatpush1.msra.mxu0 0.0
        %421 = vmatprep.subr.mxu0 0.0
        %422 = vmatpush1.msra.mxu0 0.0
        %423 = vmatprep.subr.mxu0 0.0
        %424 = vmatpush1.msra.mxu0 0.0
        %425 = vmatprep.subr.mxu0 0.0
        %426 = vmatpush1.msra.mxu0 0.0
        %427 = vmatprep.subr.mxu0 0.0
        %428 = vmatpush1.msra.mxu0 0.0
        %429 = vmatprep.subr.mxu0 0.0
        %430 = vmatpush1.msra.mxu0 0.0
        %431 = vmatprep.subr.mxu0 0.0
        %432 = vmatpush1.msra.mxu0 0.0
        %433 = vmatprep.subr.mxu0 0.0
        %434 = vmatpush1.msra.mxu0 0.0
        %435 = vmatprep.subr.mxu0 0.0
        %436 = vmatpush1.msra.mxu0 0.0
        %437 = vmatprep.subr.mxu0 0.0
        %438 = vmatpush1.msra.mxu0 0.0
        %439 = vmatprep.subr.mxu0 0.0
        %440 = vmatpush1.msra.mxu0 0.0
        %441 = vmatprep.subr.mxu0 0.0
        %442 = vmatpush1.msra.mxu0 0.0
        %443 = vmatprep.subr.mxu0 0.0
        %444 = vmatpush1.msra.mxu0 0.0
        %445 = vmatprep.subr.mxu0 0.0
        %446 = vmatpush1.msra.mxu0 0.0
        %447 = vmatprep.subr.mxu0 0.0
        %448 = vmatpush1.msra.mxu0 0.0
        %449 = vmatprep.subr.mxu0 0.0
        %450 = vmatpush1.msra.mxu0 0.0
        %451 = vmatprep.mubr.f32.mxu0 0.0
        %452 = vmatmul.mubr.f32.gmra.mrb[0].mxu0 %v340
        %v453 = vpop.f32.mrb[0].mxu0
        %v454 = vadd.f32 0.0, %v453
        %v455 = vpop.f32.mrb[0].mxu0
        %456 = vmatprep.mubr.f32.mxu0 0.0
        %457 = vmatmul.mubr.f32.gmra.mrb[0].mxu0 %v343
        %v458 = vpop.f32.mrb[0].mxu0
        %v459 = vadd.f32 0.0, %v458
        %v460 = vpop.f32.mrb[0].mxu0
        %461 = vmatprep.mubr.f32.mxu0 0.0
        %462 = vmatmul.mubr.f32.gmra.mrb[0].mxu0 %v346
        %v463 = vpop.f32.mrb[0].mxu0
        %v464 = vadd.f32 0.0, %v463
        %v465 = vpop.f32.mrb[0].mxu0
        %466 = vmatprep.mubr.f32.mxu0 0.0
        %467 = vmatmul.mubr.f32.gmra.mrb[0].mxu0 %v349
        %v468 = vpop.f32.mrb[0].mxu0
        %v469 = vadd.f32 0.0, %v468
        %v470 = vpop.f32.mrb[0].mxu0
        %471 = vmatprep.mubr.f32.mxu0 0.0
        %472 = vmatmul.mubr.f32.gmra.mrb[0].mxu0 %v352
        %v473 = vpop.f32.mrb[0].mxu0
        %v474 = vadd.f32 0.0, %v473
        %v475 = vpop.f32.mrb[0].mxu0
        %476 = vmatprep.mubr.f32.mxu0 0.0
        %477 = vmatmul.mubr.f32.gmra.mrb[0].mxu0 %v355
        %v478 = vpop.f32.mrb[0].mxu0
        %v479 = vadd.f32 0.0, %v478
        %v480 = vpop.f32.mrb[0].mxu0
        %481 = vmatprep.mubr.f32.mxu0 0.0
        %482 = vmatmul.mubr.f32.gmra.mrb[0].mxu0 %v358
        %v483 = vpop.f32.mrb[0].mxu0
        %v484 = vadd.f32 0.0, %v483
        %v485 = vpop.f32.mrb[0].mxu0
        %486 = vmatprep.mubr.f32.mxu0 0.0
        %487 = vmatmul.mubr.f32.gmra.mrb[0].mxu0 %v361
        %v488 = vpop.f32.mrb[0].mxu0
        %v489 = vadd.f32 0.0, %v488
        %v490 = vpop.f32.mrb[0].mxu0
        %491 = vmatprep.mubr.f32.mxu0 0.0
        %492 = vmatmul.mubr.f32.gmra.mrb[0].mxu0 %v364
        %v493 = vpop.f32.mrb[0].mxu0
        %v494 = vadd.f32 0.0, %v493
        %v495 = vpop.f32.mrb[0].mxu0
        %496 = vmatprep.mubr.f32.mxu0 0.0
        %497 = vmatmul.mubr.f32.gmra.mrb[0].mxu0 %v367
        %v498 = vpop.f32.mrb[0].mxu0
        %v499 = vadd.f32 0.0, %v498
        %v500 = vpop.f32.mrb[0].mxu0
        %501 = vmatprep.mubr.f32.mxu0 0.0
        %502 = vmatmul.mubr.f32.gmra.mrb[0].mxu0 %v370
        %v503 = vpop.f32.mrb[0].mxu0
        %v504 = vadd.f32 0.0, %v503
        %v505 = vpop.f32.mrb[0].mxu0
        %506 = vmatprep.mubr.f32.mxu0 0.0
        %507 = vmatmul.mubr.f32.gmra.mrb[0].mxu0 %v373
        %v508 = vpop.f32.mrb[0].mxu0
        %v509 = vadd.f32 0.0, %v508
        %v510 = vpop.f32.mrb[0].mxu0
        %511 = vmatprep.mubr.f32.mxu0 0.0
        %512 = vmatmul.mubr.f32.gmra.mrb[0].mxu0 %v376
        %v513 = vpop.f32.mrb[0].mxu0
        %v514 = vadd.f32 0.0, %v513
        %v515 = vpop.f32.mrb[0].mxu0
        %516 = vmatprep.mubr.f32.mxu0 0.0
        %517 = vmatmul.mubr.f32.gmra.mrb[0].mxu0 %v379
        %v518 = vpop.f32.mrb[0].mxu0
        %v519 = vadd.f32 0.0, %v518
        %v520 = vpop.f32.mrb[0].mxu0
        %521 = vmatprep.mubr.f32.mxu0 0.0
        %522 = vmatmul.mubr.f32.gmra.mrb[0].mxu0 %v382
        %v523 = vpop.f32.mrb[0].mxu0
        %v524 = vadd.f32 0.0, %v523
        %v525 = vpop.f32.mrb[0].mxu0
        %526 = vmatprep.mubr.f32.mxu0 0.0
        %527 = vmatmul.mubr.f32.gmra.mrb[0].mxu0 %v385
        %v528 = vpop.f32.mrb[0].mxu0
        %v529 = vadd.f32 0.0, %v528
        %v530 = vpop.f32.mrb[0].mxu0
        %531 = vdwg.mxu0
        %v532 = vlaneseq
        %v533 = vshrl.u32 %v532, 7
        %v534 = vsub.s32 0, %v533
        %v535 = vrot.slane %v288, %v534
        %v536 = vmul.f32 %v454, %v535
        %v537 = vmul.f32 %v459, %v535
        %v538 = vmul.f32 %v464, %v535
        %v539 = vmul.f32 %v469, %v535
        %v540 = vmul.f32 %v474, %v535
        %v541 = vmul.f32 %v479, %v535
        %v542 = vmul.f32 %v484, %v535
        %v543 = vmul.f32 %v489, %v535
        %v544 = vmul.f32 %v494, %v535
        %v545 = vmul.f32 %v499, %v535
        %v546 = vmul.f32 %v504, %v535
        %v547 = vmul.f32 %v509, %v535
        %v548 = vmul.f32 %v514, %v535
        %v549 = vmul.f32 %v519, %v535
        %v550 = vmul.f32 %v524, %v535
        %v551 = vmul.f32 %v529, %v535
        %vm552 = vcmp.eq.f32.partialorder %v272, 1.0
        %vm553 = vcmp.eq.f32.partialorder %v273, 1.0
        %vm554 = vcmp.eq.f32.partialorder %v274, 1.0
        %vm555 = vcmp.eq.f32.partialorder %v275, 1.0
        %vm556 = vcmp.eq.f32.partialorder %v276, 1.0
        %vm557 = vcmp.eq.f32.partialorder %v277, 1.0
        %vm558 = vcmp.eq.f32.partialorder %v278, 1.0
        %vm559 = vcmp.eq.f32.partialorder %v279, 1.0
        %vm560 = vcmp.eq.f32.partialorder %v280, 1.0
        %vm561 = vcmp.eq.f32.partialorder %v281, 1.0
        %vm562 = vcmp.eq.f32.partialorder %v282, 1.0
        %vm563 = vcmp.eq.f32.partialorder %v283, 1.0
        %vm564 = vcmp.eq.f32.partialorder %v284, 1.0
        %vm565 = vcmp.eq.f32.partialorder %v285, 1.0
        %vm566 = vcmp.eq.f32.partialorder %v286, 1.0
        %vm567 = vcmp.eq.f32.partialorder %v287, 1.0
        %v568 = vsel %vm552, 1, 0
        %v569 = vsel %vm553, 1, 0
        %v570 = vsel %vm554, 1, 0
        %v571 = vsel %vm555, 1, 0
        %v572 = vsel %vm556, 1, 0
        %v573 = vsel %vm557, 1, 0
        %v574 = vsel %vm558, 1, 0
        %v575 = vsel %vm559, 1, 0
        %v576 = vsel %vm560, 1, 0
        %v577 = vsel %vm561, 1, 0
        %v578 = vsel %vm562, 1, 0
        %v579 = vsel %vm563, 1, 0
        %v580 = vsel %vm564, 1, 0
        %v581 = vsel %vm565, 1, 0
        %v582 = vsel %vm566, 1, 0
        %v583 = vsel %vm567, 1, 0
        %v584 = vcvt.s32.f32 %v568
        %v585 = vcvt.s32.f32 %v569
        %v586 = vcvt.s32.f32 %v570
        %v587 = vcvt.s32.f32 %v571
        %v588 = vcvt.s32.f32 %v572
        %v589 = vcvt.s32.f32 %v573
        %v590 = vcvt.s32.f32 %v574
        %v591 = vcvt.s32.f32 %v575
        %v592 = vcvt.s32.f32 %v576
        %v593 = vcvt.s32.f32 %v577
        %v594 = vcvt.s32.f32 %v578
        %v595 = vcvt.s32.f32 %v579
        %v596 = vcvt.s32.f32 %v580
        %v597 = vcvt.s32.f32 %v581
        %v598 = vcvt.s32.f32 %v582
        %v599 = vcvt.s32.f32 %v583
        %v601 = vsel %vm338, %v584, 0
        %v604 = vsel %vm338, %v585, 0
        %v607 = vsel %vm338, %v586, 0
        %v610 = vsel %vm338, %v587, 0
        %v613 = vsel %vm338, %v588, 0
        %v616 = vsel %vm338, %v589, 0
        %v619 = vsel %vm338, %v590, 0
        %v622 = vsel %vm338, %v591, 0
        %v625 = vsel %vm338, %v592, 0
        %v628 = vsel %vm338, %v593, 0
        %v631 = vsel %vm338, %v594, 0
        %v634 = vsel %vm338, %v595, 0
        %v637 = vsel %vm338, %v596, 0
        %v640 = vsel %vm338, %v597, 0
        %v643 = vsel %vm338, %v598, 0
        %v646 = vsel %vm338, %v599, 0
        %648 = vmatprep.subr.mxu0 0.0
        %649 = vmatpush1.msra.mxu0 %v289
        %650 = vmatprep.subr.mxu0 0.0
        %651 = vmatpush1.msra.mxu0 0.0
        %652 = vmatprep.subr.mxu0 0.0
        %653 = vmatpush1.msra.mxu0 0.0
        %654 = vmatprep.subr.mxu0 0.0
        %655 = vmatpush1.msra.mxu0 0.0
        %656 = vmatprep.subr.mxu0 0.0
        %657 = vmatpush1.msra.mxu0 0.0
        %658 = vmatprep.subr.mxu0 0.0
        %659 = vmatpush1.msra.mxu0 0.0
        %660 = vmatprep.subr.mxu0 0.0
        %661 = vmatpush1.msra.mxu0 0.0
        %662 = vmatprep.subr.mxu0 0.0
        %663 = vmatpush1.msra.mxu0 0.0
        %664 = vmatprep.subr.mxu0 0.0
        %665 = vmatpush1.msra.mxu0 0.0
        %666 = vmatprep.subr.mxu0 0.0
        %667 = vmatpush1.msra.mxu0 0.0
        %668 = vmatprep.subr.mxu0 0.0
        %669 = vmatpush1.msra.mxu0 0.0
        %670 = vmatprep.subr.mxu0 0.0
        %671 = vmatpush1.msra.mxu0 0.0
        %672 = vmatprep.subr.mxu0 0.0
        %673 = vmatpush1.msra.mxu0 0.0
        %674 = vmatprep.subr.mxu0 0.0
        %675 = vmatpush1.msra.mxu0 0.0
        %676 = vmatprep.subr.mxu0 0.0
        %677 = vmatpush1.msra.mxu0 0.0
        %678 = vmatprep.subr.mxu0 0.0
        %679 = vmatpush1.msra.mxu0 0.0
        %680 = vmatprep.subr.mxu0 0.0
        %681 = vmatpush1.msra.mxu0 0.0
        %682 = vmatprep.subr.mxu0 0.0
        %683 = vmatpush1.msra.mxu0 0.0
        %684 = vmatprep.subr.mxu0 0.0
        %685 = vmatpush1.msra.mxu0 0.0
        %686 = vmatprep.subr.mxu0 0.0
        %687 = vmatpush1.msra.mxu0 0.0
        %688 = vmatprep.subr.mxu0 0.0
        %689 = vmatpush1.msra.mxu0 0.0
        %690 = vmatprep.subr.mxu0 0.0
        %691 = vmatpush1.msra.mxu0 0.0
        %692 = vmatprep.subr.mxu0 0.0
        %693 = vmatpush1.msra.mxu0 0.0
        %694 = vmatprep.subr.mxu0 0.0
        %695 = vmatpush1.msra.mxu0 0.0
        %696 = vmatprep.subr.mxu0 0.0
        %697 = vmatpush1.msra.mxu0 0.0
        %698 = vmatprep.subr.mxu0 0.0
        %699 = vmatpush1.msra.mxu0 0.0
        %700 = vmatprep.subr.mxu0 0.0
        %701 = vmatpush1.msra.mxu0 0.0
        %702 = vmatprep.subr.mxu0 0.0
        %703 = vmatpush1.msra.mxu0 0.0
        %704 = vmatprep.subr.mxu0 0.0
        %705 = vmatpush1.msra.mxu0 0.0
        %706 = vmatprep.subr.mxu0 0.0
        %707 = vmatpush1.msra.mxu0 0.0
        %708 = vmatprep.subr.mxu0 0.0
        %709 = vmatpush1.msra.mxu0 0.0
        %710 = vmatprep.subr.mxu0 0.0
        %711 = vmatpush1.msra.mxu0 0.0
        %712 = vmatprep.mubr.f32.mxu0 0.0
        %713 = vmatmul.mubr.f32.gmra.mrb[0].mxu0 %v601
        %v714 = vpop.f32.mrb[0].mxu0
        %v715 = vadd.f32 0.0, %v714
        %v716 = vpop.f32.mrb[0].mxu0
        %717 = vmatprep.mubr.f32.mxu0 0.0
        %718 = vmatmul.mubr.f32.gmra.mrb[0].mxu0 %v604
        %v719 = vpop.f32.mrb[0].mxu0
        %v720 = vadd.f32 0.0, %v719
        %v721 = vpop.f32.mrb[0].mxu0
        %722 = vmatprep.mubr.f32.mxu0 0.0
        %723 = vmatmul.mubr.f32.gmra.mrb[0].mxu0 %v607
        %v724 = vpop.f32.mrb[0].mxu0
        %v725 = vadd.f32 0.0, %v724
        %v726 = vpop.f32.mrb[0].mxu0
        %727 = vmatprep.mubr.f32.mxu0 0.0
        %728 = vmatmul.mubr.f32.gmra.mrb[0].mxu0 %v610
        %v729 = vpop.f32.mrb[0].mxu0
        %v730 = vadd.f32 0.0, %v729
        %v731 = vpop.f32.mrb[0].mxu0
        %732 = vmatprep.mubr.f32.mxu0 0.0
        %733 = vmatmul.mubr.f32.gmra.mrb[0].mxu0 %v613
        %v734 = vpop.f32.mrb[0].mxu0
        %v735 = vadd.f32 0.0, %v734
        %v736 = vpop.f32.mrb[0].mxu0
        %737 = vmatprep.mubr.f32.mxu0 0.0
        %738 = vmatmul.mubr.f32.gmra.mrb[0].mxu0 %v616
        %v739 = vpop.f32.mrb[0].mxu0
        %v740 = vadd.f32 0.0, %v739
        %v741 = vpop.f32.mrb[0].mxu0
        %742 = vmatprep.mubr.f32.mxu0 0.0
        %743 = vmatmul.mubr.f32.gmra.mrb[0].mxu0 %v619
        %v744 = vpop.f32.mrb[0].mxu0
        %v745 = vadd.f32 0.0, %v744
        %v746 = vpop.f32.mrb[0].mxu0
        %747 = vmatprep.mubr.f32.mxu0 0.0
        %748 = vmatmul.mubr.f32.gmra.mrb[0].mxu0 %v622
        %v749 = vpop.f32.mrb[0].mxu0
        %v750 = vadd.f32 0.0, %v749
        %v751 = vpop.f32.mrb[0].mxu0
        %752 = vmatprep.mubr.f32.mxu0 0.0
        %753 = vmatmul.mubr.f32.gmra.mrb[0].mxu0 %v625
        %v754 = vpop.f32.mrb[0].mxu0
        %v755 = vadd.f32 0.0, %v754
        %v756 = vpop.f32.mrb[0].mxu0
        %757 = vmatprep.mubr.f32.mxu0 0.0
        %758 = vmatmul.mubr.f32.gmra.mrb[0].mxu0 %v628
        %v759 = vpop.f32.mrb[0].mxu0
        %v760 = vadd.f32 0.0, %v759
        %v761 = vpop.f32.mrb[0].mxu0
        %762 = vmatprep.mubr.f32.mxu0 0.0
        %763 = vmatmul.mubr.f32.gmra.mrb[0].mxu0 %v631
        %v764 = vpop.f32.mrb[0].mxu0
        %v765 = vadd.f32 0.0, %v764
        %v766 = vpop.f32.mrb[0].mxu0
        %767 = vmatprep.mubr.f32.mxu0 0.0
        %768 = vmatmul.mubr.f32.gmra.mrb[0].mxu0 %v634
        %v769 = vpop.f32.mrb[0].mxu0
        %v770 = vadd.f32 0.0, %v769
        %v771 = vpop.f32.mrb[0].mxu0
        %772 = vmatprep.mubr.f32.mxu0 0.0
        %773 = vmatmul.mubr.f32.gmra.mrb[0].mxu0 %v637
        %v774 = vpop.f32.mrb[0].mxu0
        %v775 = vadd.f32 0.0, %v774
        %v776 = vpop.f32.mrb[0].mxu0
        %777 = vmatprep.mubr.f32.mxu0 0.0
        %778 = vmatmul.mubr.f32.gmra.mrb[0].mxu0 %v640
        %v779 = vpop.f32.mrb[0].mxu0
        %v780 = vadd.f32 0.0, %v779
        %v781 = vpop.f32.mrb[0].mxu0
        %782 = vmatprep.mubr.f32.mxu0 0.0
        %783 = vmatmul.mubr.f32.gmra.mrb[0].mxu0 %v643
        %v784 = vpop.f32.mrb[0].mxu0
        %v785 = vadd.f32 0.0, %v784
        %v786 = vpop.f32.mrb[0].mxu0
        %787 = vmatprep.mubr.f32.mxu0 0.0
        %788 = vmatmul.mubr.f32.gmra.mrb[0].mxu0 %v646
        %v789 = vpop.f32.mrb[0].mxu0
        %v790 = vadd.f32 0.0, %v789
        %v791 = vpop.f32.mrb[0].mxu0
        %792 = vdwg.mxu0
        %v793 = vlaneseq
        %v794 = vshrl.u32 %v793, 7
        %v795 = vsub.s32 1, %v794
        %v796 = vrot.slane %v288, %v795
        %v797 = vmul.f32 %v715, %v796
        %v798 = vmul.f32 %v720, %v796
        %v799 = vmul.f32 %v725, %v796
        %v800 = vmul.f32 %v730, %v796
        %v801 = vmul.f32 %v735, %v796
        %v802 = vmul.f32 %v740, %v796
        %v803 = vmul.f32 %v745, %v796
        %v804 = vmul.f32 %v750, %v796
        %v805 = vmul.f32 %v755, %v796
        %v806 = vmul.f32 %v760, %v796
        %v807 = vmul.f32 %v765, %v796
        %v808 = vmul.f32 %v770, %v796
        %v809 = vmul.f32 %v775, %v796
        %v810 = vmul.f32 %v780, %v796
        %v811 = vmul.f32 %v785, %v796
        %v812 = vmul.f32 %v790, %v796
        %v813 = vadd.f32 %v536, %v797
        %v814 = vadd.f32 %v537, %v798
        %v815 = vadd.f32 %v538, %v799
        %v816 = vadd.f32 %v539, %v800
        %v817 = vadd.f32 %v540, %v801
        %v818 = vadd.f32 %v541, %v802
        %v819 = vadd.f32 %v542, %v803
        %v820 = vadd.f32 %v543, %v804
        %v821 = vadd.f32 %v544, %v805
        %v822 = vadd.f32 %v545, %v806
        %v823 = vadd.f32 %v546, %v807
        %v824 = vadd.f32 %v547, %v808
        %v825 = vadd.f32 %v548, %v809
        %v826 = vadd.f32 %v549, %v810
        %v827 = vadd.f32 %v550, %v811
        %v828 = vadd.f32 %v551, %v812
        %v829 = vld [vmem:[%s202] sm:$0xff]
        %v830 = vld [vmem:[%s202 + $0x8] sm:$0xff]
        %v831 = vld [vmem:[%s202 + $0x10] sm:$0xff]
        %v832 = vld [vmem:[%s202 + $0x18] sm:$0xff]
        %v833 = vld [vmem:[%s202 + $0x20] sm:$0xff]
        %v834 = vld [vmem:[%s202 + $0x28] sm:$0xff]
        %v835 = vld [vmem:[%s202 + $0x30] sm:$0xff]
        %v836 = vld [vmem:[%s202 + $0x38] sm:$0xff]
        %v837 = vld [vmem:[%s202 + $0x40] sm:$0xff]
        %v838 = vld [vmem:[%s202 + $0x48] sm:$0xff]
        %v839 = vld [vmem:[%s202 + $0x50] sm:$0xff]
        %v840 = vld [vmem:[%s202 + $0x58] sm:$0xff]
        %v841 = vld [vmem:[%s202 + $0x60] sm:$0xff]
        %v842 = vld [vmem:[%s202 + $0x68] sm:$0xff]
        %v843 = vld [vmem:[%s202 + $0x70] sm:$0xff]
        %v844 = vld [vmem:[%s202 + $0x78] sm:$0xff]
        %v845 = vmul.f32 %v829, %v813
        %v846 = vmul.f32 %v830, %v814
        %v847 = vmul.f32 %v831, %v815
        %v848 = vmul.f32 %v832, %v816
        %v849 = vmul.f32 %v833, %v817
        %v850 = vmul.f32 %v834, %v818
        %v851 = vmul.f32 %v835, %v819
        %v852 = vmul.f32 %v836, %v820
        %v853 = vmul.f32 %v837, %v821
        %v854 = vmul.f32 %v838, %v822
        %v855 = vmul.f32 %v839, %v823
        %v856 = vmul.f32 %v840, %v824
        %v857 = vmul.f32 %v841, %v825
        %v858 = vmul.f32 %v842, %v826
        %v859 = vmul.f32 %v843, %v827
        %v860 = vmul.f32 %v844, %v828
        %861 = vst [vmem:[%s231] sm:$0xff] %v845
        %862 = vst [vmem:[%s231 + $0x8] sm:$0xff] %v846
        %863 = vst [vmem:[%s231 + $0x10] sm:$0xff] %v847
        %864 = vst [vmem:[%s231 + $0x18] sm:$0xff] %v848
        %865 = vst [vmem:[%s231 + $0x20] sm:$0xff] %v849
        %866 = vst [vmem:[%s231 + $0x28] sm:$0xff] %v850
        %867 = vst [vmem:[%s231 + $0x30] sm:$0xff] %v851
        %868 = vst [vmem:[%s231 + $0x38] sm:$0xff] %v852
        %869 = vst [vmem:[%s231 + $0x40] sm:$0xff] %v853
        %870 = vst [vmem:[%s231 + $0x48] sm:$0xff] %v854
        %871 = vst [vmem:[%s231 + $0x50] sm:$0xff] %v855
        %872 = vst [vmem:[%s231 + $0x58] sm:$0xff] %v856
        %873 = vst [vmem:[%s231 + $0x60] sm:$0xff] %v857
        %874 = vst [vmem:[%s231 + $0x68] sm:$0xff] %v858
        %875 = vst [vmem:[%s231 + $0x70] sm:$0xff] %v859
        %876 = vst [vmem:[%s231 + $0x78] sm:$0xff] %v860
        %s877 = sand.u32 %s123, 1
        %s878 = scalar_lea.sflag [#allocation4], %s877
        %s879 = sand.u32 %s123, 1
        %s880 = smul.addr %s879, 128
        %s881 = scalar_lea.vmem [#allocation5], %s880
        // Predicated region
        $region41: #{tpu_custom_call.1} parent=35 // pred_check
          %p882 = pneg %p133
        $region42: #{tpu_custom_call.1} parent=35 // pred_check_branch
          %884 = sbr.rel (%p882) target = $region44
        $region43: #{tpu_custom_call.1} parent=35 // pred_region
          %s885 = smul.u32 16, %s21
          %s887 = ssub.s32 2048, 2048
          %888 = vsyncadd %s878, %s887
          %s889 = smul.addr %s885, 128
          %s890 = scalar_lea.hbm %s4, %s889
          %s891 = sshll.u32 %s881, 4
          %s892 = int_to_ptr.vmem [resolvable:$true] %s891
          %897 = dma.vmem_to_hbm [thread:$0]  %s892, 2048, %s890, %s878, 128, 128, 8
        $region44: #{tpu_custom_call.1} parent=35 // pred_fallthru
          _
      $region36: #{tpu_custom_call.1} parent=5 // pred_fallthru
        _
      %p898 = scmp.le.s32.totalorder 2, %s16
      // Predicated region
      $region45: #{tpu_custom_call.1} parent=5 // pred_check
        %p899 = pneg %p898
      $region46: #{tpu_custom_call.1} parent=5 // pred_check_branch
        %901 = sbr.rel (%p899) target = $region48
      $region47: #{tpu_custom_call.1} parent=5 // pred_region
        %s902 = ssub.s32 %s16, 2
        // Predicated region
        $region49: #{tpu_custom_call.1} parent=47 // pred_check
          %p903 = pneg %p139
        $region50: #{tpu_custom_call.1} parent=47 // pred_check_branch
          %905 = sbr.rel (%p903) target = $region52
        $region51: #{tpu_custom_call.1} parent=47 // pred_region
          %s906 = sand.u32 %s124, 1
          %s907 = scalar_lea.sflag [#allocation4], %s906
          %s908 = sand.u32 %s124, 1
          %s909 = smul.addr %s908, 128
          %s910 = scalar_lea.vmem [#allocation5], %s909
          %911 = dma.done %s907, 2048
        $region52: #{tpu_custom_call.1} parent=47 // pred_fallthru
          _
      $region48: #{tpu_custom_call.1} parent=5 // pred_fallthru
        _
    $region6: #{tpu_custom_call.1} parent=1 // loop_footer
      %s20 = sadd.s32 1, %s16
    $region7: #{tpu_custom_call.1} parent=1 // loop_footer_branch
      %15 = sbr.rel target = $region3
    $region8: #{tpu_custom_call.1} parent=1 // loop_exit
      _
    %912 = vsyncpa [#allocation3], 1
    %s913 = scalar_lea.sflag [#allocation3], 1
    %914 = vsyncpa %s913, 1
    %915 = vsyncpa [#allocation4], 1
    %s916 = scalar_lea.sflag [#allocation4], 1
    %917 = vsyncpa %s916, 1

</llo_original>
